<compile_context>
chip_gen: v6e
topology: v6e:2x2x1
jax: 0.10.0
libtpu: 0.0.40
codegen_flags: <defaults>
</compile_context>

<pallas_src>
import functools
import math

import jax
import jax.numpy as jnp
from jax import lax
from jax.experimental import pallas as pl
from jax.experimental.pallas import tpu as pltpu


_ACTS = {
    'identity': lambda x: x,
    'relu': lambda x: jnp.maximum(x, 0.0),
    'elu': jax.nn.elu,
    'selu': jax.nn.selu,
    'gelu': jax.nn.gelu,
    'mish': lambda x: x * jnp.tanh(jax.nn.softplus(x)),
    'swish': jax.nn.silu,
    'hardswish': lambda x: x * jnp.clip(x + 3.0, 0.0, 6.0) / 6.0,
}


# ----------------------------- Pallas kernel --------------------------------
def convolve_kernel(lhs_ref, mask_ref, w_ref, b_ref, o_ref, *, act_fn):
    """Fused im2col-GEMM conv + bias -> * mask -> activation.

    lhs_ref : (rb, K*K*Cin) bf16  im2col rows for this block of output pixels
    mask_ref: (rb, 1)       f32   spatial mask, one row per output pixel
    w_ref   : (K*K*Cin, Cout) bf16  conv weight, rows ordered (ky, kx, cin)
    b_ref   : (1, Cout)     f32   conv bias
    o_ref   : (rb, Cout)    f32   lane-dense output slab (Cout = 128)
    """
    # Single MXU pass (bf16 operands, f32 accumulation), fused f32 epilogue,
    # exactly one store of the output block.
    acc = jnp.dot(lhs_ref[...], w_ref[...], preferred_element_type=jnp.float32)
    o_ref[...] = act_fn((acc + b_ref[...]) * mask_ref[...]).astype(o_ref.dtype)


# ------------------------------ wrapper --------------------------------------
@functools.partial(jax.jit, static_argnames=('activation',))
def convolve(x, mask, weight, bias, activation='relu'):
    """x: (B, Cin, H, W) f32 (NCHW, like the PyTorch module); mask: (B, 1, H, W);
    weight: (Cout, Cin, K, K) (OIHW); bias: (Cout,).  Returns (B, Cout, H, W)."""
    B, Cin, H, W = x.shape
    Cout, _, K, _ = weight.shape
    pad = K // 2
    rows = B * H * W
    kkc = K * K * Cin

    # --- plain-JAX glue: NCHW -> NHWC, halo pad, im2col, bf16 operands ---
    x_nhwc = jnp.transpose(x, (0, 2, 3, 1))                       # (B,H,W,Cin)
    xpad = jnp.pad(x_nhwc, ((0, 0), (pad, pad), (pad, pad), (0, 0)))
    # Concat the K*K shifted windows along the channel axis: column order is
    # (ky, kx, cin), which must match the weight reshape below.
    patches = [xpad[:, ky:ky + H, kx:kx + W, :]
               for ky in range(K) for kx in range(K)]
    lhs = jnp.concatenate(patches, axis=-1).reshape(rows, kkc)
    lhs = lhs.astype(jnp.bfloat16)                                # cast once

    # OIHW -> (K, K, Cin, Cout) -> (K*K*Cin, Cout), rows ordered (ky, kx, cin).
    w2d = jnp.transpose(weight, (2, 3, 1, 0)).reshape(kkc, Cout).astype(jnp.bfloat16)
    b_row = bias.reshape(1, Cout).astype(jnp.float32)
    mask_rows = jnp.transpose(mask, (0, 2, 3, 1)).reshape(rows, 1).astype(jnp.float32)

    # Tile the rows axis (parallel -> both v7x TensorCores; harmless on 1-TC chips).
    block_rows = 256 if (rows % 256 == 0 and rows > 256) else rows
    assert rows % block_rows == 0
    grid = (rows // block_rows,)

    grid_spec = pltpu.PrefetchScalarGridSpec(
        num_scalar_prefetch=0,
        grid=grid,
        in_specs=[
            pl.BlockSpec((block_rows, kkc), lambda i: (i, 0)),    # im2col rows (bf16)
            pl.BlockSpec((block_rows, 1), lambda i: (i, 0)),      # mask rows
            pl.BlockSpec((kkc, Cout), lambda i: (0, 0)),          # weight (resident)
            pl.BlockSpec((1, Cout), lambda i: (0, 0)),            # bias (resident)
        ],
        out_specs=pl.BlockSpec((block_rows, Cout), lambda i: (i, 0)),  # lane-dense slab
    )

    out_rows = pl.pallas_call(
        functools.partial(convolve_kernel, act_fn=_ACTS[activation]),
        out_shape=jax.ShapeDtypeStruct((rows, Cout), jnp.float32),
        grid_spec=grid_spec,
        compiler_params=pltpu.CompilerParams(dimension_semantics=("parallel",)),
    )(lhs, mask_rows, w2d, b_row)

    # (B*H*W, Cout) -> (B, Cout, H, W) to match the PyTorch module's layout.
    return jnp.transpose(out_rows.reshape(B, H, W, Cout), (0, 3, 1, 2))


# --------------------------- pure-JAX reference -------------------------------
def convolve_ref(x, mask, weight, bias, activation='relu'):
    out = lax.conv_general_dilated(
        x, weight, window_strides=(1, 1), padding='SAME',
        dimension_numbers=('NCHW', 'OIHW', 'NCHW'),
        precision=lax.Precision.HIGHEST)
    out = (out + bias.reshape(1, -1, 1, 1)) * mask
    return _ACTS[activation](out)


# ------------------------------------ main ------------------------------------
if __name__ == "__main__":
    B, Cin, H, W = 2, 4, 16, 16      # x matches PyTorch NCHW (2, 4, 16, 16)
    Cout, K = 128, 3                 # Cout = 128 keeps the output lane axis dense
    act = 'relu'

    key = jax.random.PRNGKey(0)
    kx, km, kw, kb = jax.random.split(key, 4)

    x = jax.random.normal(kx, (B, Cin, H, W), jnp.float32)
    mask = (jax.random.uniform(km, (B, 1, H, W)) > 0.2).astype(jnp.float32)

    # xavier_normal_(gain=sqrt(2) for relu) like Convolve._init_weights; the module
    # zero-inits the bias -- a small random bias is used here to exercise the add.
    fan_in, fan_out = Cin * K * K, Cout * K * K
    std = math.sqrt(2.0) * math.sqrt(2.0 / (fan_in + fan_out))
    weight = std * jax.random.normal(kw, (Cout, Cin, K, K), jnp.float32)
    bias = 0.1 * jax.random.normal(kb, (Cout,), jnp.float32)

    out = convolve(x, mask, weight, bias, act)
    out = jax.block_until_ready(out)

    ref = convolve_ref(x, mask, weight, bias, act)
    assert out.shape == ref.shape == (B, Cout, H, W)
    # bf16 MXU operands (f32 accumulation) vs. an f32 HIGHEST-precision reference.
    assert jnp.allclose(out, ref, rtol=2e-2, atol=2e-2), (
        float(jnp.max(jnp.abs(out - ref))))

    print("KERNEL_OK")
</pallas_src>

<mosaic_0001>
module attributes {stable_mosaic.version = 11 : i64} {
  func.func @convolve_kernel(%arg0: i32, %arg1: memref<256x36xbf16, #tpu.memory_space<vmem>>, %arg2: memref<256x1xf32, #tpu.memory_space<vmem>>, %arg3: memref<36x128xbf16, #tpu.memory_space<vmem>>, %arg4: memref<1x128xf32, #tpu.memory_space<vmem>>, %arg5: memref<256x128xf32, #tpu.memory_space<vmem>>) attributes {dimension_semantics = [#tpu.dimension_semantics<parallel>], iteration_bounds = array<i64: 2>, scalar_prefetch = 0 : i64, scratch_operands = 0 : i64, tpu.core_type = #tpu.core_type<tc>, window_params = [{transform_indices = @transform_0, window_bounds = array<i64: 256, 36>}, {transform_indices = @transform_1, window_bounds = array<i64: 256, 1>}, {pipeline_mode = #tpu.pipeline_mode<synchronous>, transform_indices = @transform_2, window_bounds = array<i64: 36, 128>}, {pipeline_mode = #tpu.pipeline_mode<synchronous>, transform_indices = @transform_3, window_bounds = array<i64: 1, 128>}, {transform_indices = @transform_4, window_bounds = array<i64: 256, 128>}]} {
    %c0 = arith.constant 0 : index
    %c0_0 = arith.constant 0 : index
    %0 = vector.load %arg1[%c0, %c0_0] : memref<256x36xbf16, #tpu.memory_space<vmem>>, vector<256x36xbf16>
    %c0_1 = arith.constant 0 : index
    %c0_2 = arith.constant 0 : index
    %1 = vector.load %arg3[%c0_1, %c0_2] : memref<36x128xbf16, #tpu.memory_space<vmem>>, vector<36x128xbf16>
    %cst = arith.constant dense<0.000000e+00> : vector<256x128xf32>
    %2 = tpu.matmul %0, %1, %cst {dimension_numbers = #tpu.dot_dimension_numbers<[1], [0], [0], [1], [0, 0, 1, 1], [], []>} : vector<256x36xbf16>, vector<36x128xbf16>, vector<256x128xf32> -> vector<256x128xf32>
    %c0_3 = arith.constant 0 : index
    %c0_4 = arith.constant 0 : index
    %3 = vector.load %arg4[%c0_3, %c0_4] : memref<1x128xf32, #tpu.memory_space<vmem>>, vector<1x128xf32>
    %4 = vector.broadcast %3 : vector<1x128xf32> to vector<256x128xf32>
    %5 = arith.addf %2, %4 : vector<256x128xf32>
    %c0_5 = arith.constant 0 : index
    %c0_6 = arith.constant 0 : index
    %6 = vector.load %arg2[%c0_5, %c0_6] : memref<256x1xf32, #tpu.memory_space<vmem>>, vector<256x1xf32>
    %7 = vector.broadcast %6 : vector<256x1xf32> to vector<256x128xf32>
    %8 = arith.mulf %5, %7 : vector<256x128xf32>
    %cst_7 = arith.constant 0.000000e+00 : f32
    %9 = vector.broadcast %cst_7 : f32 to vector<256x128xf32>
    %10 = arith.maximumf %8, %9 : vector<256x128xf32>
    %c0_8 = arith.constant 0 : index
    %c0_9 = arith.constant 0 : index
    %11 = vector.load %arg5[%c0_8, %c0_9] : memref<256x128xf32, #tpu.memory_space<vmem>>, vector<256x128xf32>
    tpu.vector_store %arg5[%c0_8, %c0_9], %10 {strides = array<i32>} : memref<256x128xf32, #tpu.memory_space<vmem>>, vector<256x128xf32>,
    return
  }
  func.func @transform_0(%arg0: i32) -> (i32, i32) {
    %c0_i32 = arith.constant 0 : i32
    %c0_i32_0 = arith.constant 0 : i32
    return %arg0, %c0_i32 : i32, i32
  }
  func.func @transform_1(%arg0: i32) -> (i32, i32) {
    %c0_i32 = arith.constant 0 : i32
    %c0_i32_0 = arith.constant 0 : i32
    return %arg0, %c0_i32 : i32, i32
  }
  func.func @transform_2(%arg0: i32) -> (i32, i32) {
    %c0_i32 = arith.constant 0 : i32
    %c0_i32_0 = arith.constant 0 : i32
    %c0_i32_1 = arith.constant 0 : i32
    return %c0_i32, %c0_i32_0 : i32, i32
  }
  func.func @transform_3(%arg0: i32) -> (i32, i32) {
    %c0_i32 = arith.constant 0 : i32
    %c0_i32_0 = arith.constant 0 : i32
    %c0_i32_1 = arith.constant 0 : i32
    return %c0_i32, %c0_i32_0 : i32, i32
  }
  func.func @transform_4(%arg0: i32) -> (i32, i32) {
    %c0_i32 = arith.constant 0 : i32
    %c0_i32_0 = arith.constant 0 : i32
    return %arg0, %c0_i32 : i32, i32
  }
}

</mosaic_0001>

<llo_original>
// kernel: convolve.1
$region0: #{convolve.1}
  #allocation0 [shape = 'u32[]', space=smem, size = 0x4, offset = 0x4, fixed_abs, tag = 'smem constant byte address 0x4 - core index']
  #allocation1 [shape = 'u32[144,128]{1,0:T(1,128)}', space=vmem, size = 0x12000, scoped, tag = 'internal scratch']
  %s0 = inlined_call_operand.vmem [shape: bf16[512,36], index: 0, kind: input, shape index: {}]
  %s1 = inlined_call_operand.vmem [shape: f32[512,1], index: 1, kind: input, shape index: {}]
  %s2 = inlined_call_operand.vmem [shape: bf16[36,128], index: 2, kind: input, shape index: {}]
  %s3 = inlined_call_operand.vmem [shape: f32[1,128], index: 3, kind: input, shape index: {}]
  %s4 = inlined_call_operand.hbm [shape: f32[512,128], index: 4, kind: output, shape index: {}]
  %s5 = sld [smem:[#allocation0]]
  $region49: #{convolve.1} parent=0
    _
  %s7 = ssub.s32 1, %s5
  %s8 = scalar_select 0, %s7, %s5
  $region1: #{convolve.1} parent=0
    #allocation2 [shape = 'u8[262144]{0}', space=vmem, size = 0x40000, scoped, tag = 'output window, operand 0']
    #allocation3 [shape = 's32[2]{0}', space=sflag, size = 0x8, scoped, tag = 'scoped memory for convolve.1']
    %9 = vsyncpa [#allocation3], 0
    %s10 = scalar_lea.sflag [#allocation3], 1
    %11 = vsyncpa %s10, 0
    loop: start=0, step=1, limit=4
    $region2: #{convolve.1} parent=1 // loop_pre_header
      _
    $region3: #{convolve.1} parent=1 // loop_header
      %s13 = sphi 0, %s17
      %p14 = scmp.ge.s32.totalorder %s13, 4
      %s23 = sphi 0, %s25
      %s26 = sphi 0, %s23
      %s27 = sphi 0, %s26
      %s43 = sphi 0, %s27
      %s49 = sphi 0, %s51
      %s52 = sphi 0, %s49
      %s53 = sphi 0, %s52
      %s69 = sphi 0, %s53
      %s73 = sphi 0, %s73
      %s75 = sphi 0, %s73
      %s76 = sphi 0, %s75
      %s90 = sphi 0, %s76
      %s94 = sphi 0, %s94
      %s96 = sphi 0, %s94
      %s97 = sphi 0, %s96
      %s111 = sphi 0, %s97
      %s117 = sphi 0, %s119
      %s120 = sphi 0, %s117
      %s121 = sphi 0, %s120
      %s137 = sphi 0, %s121
    $region4: #{convolve.1} parent=1 // loop_header_branch
      %16 = sbr.rel (%p14) target = $region8
    $region5: #{convolve.1} parent=1 // loop_body
      %s18 = ssub.s32 %s13, 1
      %s19 = ssub.s32 %s13, 2
      %s20 = sadd.s32 %s13, 1
      %s21 = ssub.s32 %s13, %s20
      %p22 = scmp.eq.s32.totalorder %s21, 0
      %s24 = sadd.s32 %s23, 1
      %s25 = scalar_select %p22, %s23, %s24
      %p28 = pneg %p22
      %p29 = scmp.eq.s32.totalorder %s13, 1
      %p30 = por %p28, %p29
      %p31 = scmp.ne.s32.totalorder %s23, %s26
      %p32 = scmp.eq.s32.totalorder %s13, 0
      %p33 = por %p31, %p32
      %p34 = scmp.ne.s32.totalorder %s23, %s26
      %p35 = scmp.eq.s32.totalorder %s18, 1
      %p36 = por %p34, %p35
      %p37 = scmp.ne.s32.totalorder %s26, %s27
      %p38 = scmp.eq.s32.totalorder %s18, 0
      %p39 = por %p37, %p38
      %p40 = scmp.ne.s32.totalorder %s26, %s27
      %p41 = scmp.eq.s32.totalorder %s19, 1
      %p42 = por %p40, %p41
      %p44 = scmp.ne.s32.totalorder %s27, %s43
      %p45 = scmp.eq.s32.totalorder %s19, 0
      %p46 = por %p44, %p45
      %s47 = ssub.s32 %s13, %s20
      %p48 = scmp.eq.s32.totalorder %s47, 0
      %s50 = sadd.s32 %s49, 1
      %s51 = scalar_select %p48, %s49, %s50
      %p54 = pneg %p48
      %p55 = scmp.eq.s32.totalorder %s13, 1
      %p56 = por %p54, %p55
      %p57 = scmp.ne.s32.totalorder %s49, %s52
      %p58 = scmp.eq.s32.totalorder %s13, 0
      %p59 = por %p57, %p58
      %p60 = scmp.ne.s32.totalorder %s49, %s52
      %p61 = scmp.eq.s32.totalorder %s18, 1
      %p62 = por %p60, %p61
      %p63 = scmp.ne.s32.totalorder %s52, %s53
      %p64 = scmp.eq.s32.totalorder %s18, 0
      %p65 = por %p63, %p64
      %p66 = scmp.ne.s32.totalorder %s52, %s53
      %p67 = scmp.eq.s32.totalorder %s19, 1
      %p68 = por %p66, %p67
      %p70 = scmp.ne.s32.totalorder %s53, %s69
      %p71 = scmp.eq.s32.totalorder %s19, 0
      %p72 = por %p70, %p71
      %s74 = sadd.s32 %s73, 1
      %p77 = scmp.eq.s32.totalorder %s13, 1
      %p78 = scmp.ne.s32.totalorder %s73, %s75
      %p79 = scmp.eq.s32.totalorder %s13, 0
      %p80 = por %p78, %p79
      %p81 = scmp.ne.s32.totalorder %s73, %s75
      %p82 = scmp.eq.s32.totalorder %s18, 1
      %p83 = por %p81, %p82
      %p84 = scmp.ne.s32.totalorder %s75, %s76
      %p85 = scmp.eq.s32.totalorder %s18, 0
      %p86 = por %p84, %p85
      %p87 = scmp.ne.s32.totalorder %s75, %s76
      %p88 = scmp.eq.s32.totalorder %s19, 1
      %p89 = por %p87, %p88
      %p91 = scmp.ne.s32.totalorder %s76, %s90
      %p92 = scmp.eq.s32.totalorder %s19, 0
      %p93 = por %p91, %p92
      %s95 = sadd.s32 %s94, 1
      %p98 = scmp.eq.s32.totalorder %s13, 1
      %p99 = scmp.ne.s32.totalorder %s94, %s96
      %p100 = scmp.eq.s32.totalorder %s13, 0
      %p101 = por %p99, %p100
      %p102 = scmp.ne.s32.totalorder %s94, %s96
      %p103 = scmp.eq.s32.totalorder %s18, 1
      %p104 = por %p102, %p103
      %p105 = scmp.ne.s32.totalorder %s96, %s97
      %p106 = scmp.eq.s32.totalorder %s18, 0
      %p107 = por %p105, %p106
      %p108 = scmp.ne.s32.totalorder %s96, %s97
      %p109 = scmp.eq.s32.totalorder %s19, 1
      %p110 = por %p108, %p109
      %p112 = scmp.ne.s32.totalorder %s97, %s111
      %p113 = scmp.eq.s32.totalorder %s19, 0
      %p114 = por %p112, %p113
      %s115 = ssub.s32 %s13, %s20
      %p116 = scmp.eq.s32.totalorder %s115, 0
      %s118 = sadd.s32 %s117, 1
      %s119 = scalar_select %p116, %s117, %s118
      %p122 = pneg %p116
      %p123 = scmp.eq.s32.totalorder %s13, 1
      %p124 = por %p122, %p123
      %p125 = scmp.ne.s32.totalorder %s117, %s120
      %p126 = scmp.eq.s32.totalorder %s13, 0
      %p127 = por %p125, %p126
      %p128 = scmp.ne.s32.totalorder %s117, %s120
      %p129 = scmp.eq.s32.totalorder %s18, 1
      %p130 = por %p128, %p129
      %p131 = scmp.ne.s32.totalorder %s120, %s121
      %p132 = scmp.eq.s32.totalorder %s18, 0
      %p133 = por %p131, %p132
      %p134 = scmp.ne.s32.totalorder %s120, %s121
      %p135 = scmp.eq.s32.totalorder %s19, 1
      %p136 = por %p134, %p135
      %p138 = scmp.ne.s32.totalorder %s121, %s137
      %p139 = scmp.eq.s32.totalorder %s19, 0
      %p140 = por %p138, %p139
      %p141 = scmp.le.s32.totalorder 1, %s13
      %p142 = scmp.lt.s32.totalorder %s13, 3
      %p143 = pnand %p141, %p142
      %p144 = pneg %p143
      // Predicated region
      $region9: #{convolve.1} parent=5 // pred_check
        _
      $region10: #{convolve.1} parent=5 // pred_check_branch
        %146 = sbr.rel (%p143) target = $region12
      $region11: #{convolve.1} parent=5 // pred_region
        %s147 = ssub.s32 %s13, 1
        // Predicated region
        $region13: #{convolve.1} parent=11 // pred_check
          %p148 = pneg %p86
        $region14: #{convolve.1} parent=11 // pred_check_branch
          %150 = sbr.rel (%p148) target = $region16
        $region15: #{convolve.1} parent=11 // pred_region
          _
        $region16: #{convolve.1} parent=11 // pred_fallthru
          _
        // Predicated region
        $region17: #{convolve.1} parent=11 // pred_check
          %p151 = pneg %p107
        $region18: #{convolve.1} parent=11 // pred_check_branch
          %153 = sbr.rel (%p151) target = $region20
        $region19: #{convolve.1} parent=11 // pred_region
          _
        $region20: #{convolve.1} parent=11 // pred_fallthru
          _
      $region12: #{convolve.1} parent=5 // pred_fallthru
        _
      %p154 = scmp.lt.s32.totalorder %s13, 2
      // Predicated region
      $region21: #{convolve.1} parent=5 // pred_check
        %p155 = pneg %p154
      $region22: #{convolve.1} parent=5 // pred_check_branch
        %157 = sbr.rel (%p155) target = $region24
      $region23: #{convolve.1} parent=5 // pred_region
        // Predicated region
        $region25: #{convolve.1} parent=23 // pred_check
          %p158 = pneg %p33
        $region26: #{convolve.1} parent=23 // pred_check_branch
          %160 = sbr.rel (%p158) target = $region28
        $region27: #{convolve.1} parent=23 // pred_region
          %s161 = smul.u32 32, %s13
          %p162 = scmp.lt.s32.totalorder %s161, 63
          %s163 = scalar_select %p162, %s161, 63
          %s164 = smul.addr %s163, 4
          %s165 = scalar_lea.vmem %s0, %s164
          %s166 = smul.u32 32, %s13
        $region28: #{convolve.1} parent=23 // pred_fallthru
          _
        // Predicated region
        $region29: #{convolve.1} parent=23 // pred_check
          %p167 = pneg %p59
        $region30: #{convolve.1} parent=23 // pred_check_branch
          %169 = sbr.rel (%p167) target = $region32
        $region31: #{convolve.1} parent=23 // pred_region
          %s170 = smul.u32 32, %s13
          %p171 = scmp.lt.s32.totalorder %s170, 63
          %s172 = scalar_select %p171, %s170, 63
          %s173 = smul.addr %s172, 8
          %s174 = scalar_lea.vmem %s1, %s173
          %s175 = smul.u32 32, %s13
        $region32: #{convolve.1} parent=23 // pred_fallthru
          _
      $region24: #{convolve.1} parent=5 // pred_fallthru
        _
      %p176 = scmp.le.s32.totalorder 1, %s13
      %p177 = scmp.lt.s32.totalorder %s13, 3
      %p178 = pnand %p176, %p177
      %p179 = pneg %p178
      // Predicated region
      $region33: #{convolve.1} parent=5 // pred_check
        _
      $region34: #{convolve.1} parent=5 // pred_check_branch
        %181 = sbr.rel (%p178) target = $region36
      $region35: #{convolve.1} parent=5 // pred_region
        %s182 = ssub.s32 %s13, 1
        %s183 = smul.u32 32, %s18
        %p184 = scmp.lt.s32.totalorder %s183, 63
        %s185 = scalar_select %p184, %s183, 63
        %s186 = smul.addr %s185, 4
        %s187 = scalar_lea.vmem %s0, %s186
        %p188 = pneg %p39
        %p189 = pneg %p36
        %s190 = smul.u32 32, %s18
        %p191 = scmp.lt.s32.totalorder %s190, 63
        %s192 = scalar_select %p191, %s190, 63
        %s193 = smul.addr %s192, 8
        %s194 = scalar_lea.vmem %s1, %s193
        %p195 = pneg %p65
        %p196 = pneg %p62
        %p197 = pneg %p86
        %p198 = pneg %p83
        %p199 = pneg %p107
        %p200 = pneg %p104
        %p201 = pneg %p133
        %p202 = pneg %p130
        %s203 = sand.u32 %s120, 1
        %s204 = scalar_lea.sflag [#allocation3], %s203
        %s205 = sand.u32 %s120, 1
        %s206 = smul.addr %s205, 256
        %s207 = scalar_lea.vmem [#allocation2], %s206
        %s208 = smul.u32 32, %s18
        %p209 = scmp.lt.s32.totalorder %s208, 63
        %s210 = scalar_select %p209, %s208, 63
        %s211 = smul.addr %s210, 4
        %s212 = scalar_lea.vmem %s0, %s211
        %s213 = smul.u32 32, %s18
        %s214 = smul.u32 32, %s18
        %p215 = scmp.lt.s32.totalorder %s214, 63
        %s216 = scalar_select %p215, %s214, 63
        %s217 = smul.addr %s216, 8
        %s218 = scalar_lea.vmem %s1, %s217
        %s219 = smul.u32 32, %s18
        %s220 = smul.u32 32, %s18
        %v222 = vld [vmem:[%s212] sm:$0xf]
        %v223 = vld [vmem:[%s212 + $0x4] sm:$0xf]
        %v224 = vld [vmem:[%s212 + $0x8] sm:$0xf]
        %v225 = vld [vmem:[%s212 + $0xc] sm:$0xf]
        %v226 = vld [vmem:[%s212 + $0x10] sm:$0xf]
        %v227 = vld [vmem:[%s212 + $0x14] sm:$0xf]
        %v228 = vld [vmem:[%s212 + $0x18] sm:$0xf]
        %v229 = vld [vmem:[%s212 + $0x1c] sm:$0xf]
        %v230 = vld [vmem:[%s212 + $0x20] sm:$0xf]
        %v231 = vld [vmem:[%s212 + $0x24] sm:$0xf]
        %v232 = vld [vmem:[%s212 + $0x28] sm:$0xf]
        %v233 = vld [vmem:[%s212 + $0x2c] sm:$0xf]
        %v234 = vld [vmem:[%s212 + $0x30] sm:$0xf]
        %v235 = vld [vmem:[%s212 + $0x34] sm:$0xf]
        %v236 = vld [vmem:[%s212 + $0x38] sm:$0xf]
        %v237 = vld [vmem:[%s212 + $0x3c] sm:$0xf]
        %v238 = vld [vmem:[%s212 + $0x40] sm:$0xf]
        %v239 = vld [vmem:[%s212 + $0x44] sm:$0xf]
        %v240 = vld [vmem:[%s212 + $0x48] sm:$0xf]
        %v241 = vld [vmem:[%s212 + $0x4c] sm:$0xf]
        %v242 = vld [vmem:[%s212 + $0x50] sm:$0xf]
        %v243 = vld [vmem:[%s212 + $0x54] sm:$0xf]
        %v244 = vld [vmem:[%s212 + $0x58] sm:$0xf]
        %v245 = vld [vmem:[%s212 + $0x5c] sm:$0xf]
        %v246 = vld [vmem:[%s212 + $0x60] sm:$0xf]
        %v247 = vld [vmem:[%s212 + $0x64] sm:$0xf]
        %v248 = vld [vmem:[%s212 + $0x68] sm:$0xf]
        %v249 = vld [vmem:[%s212 + $0x6c] sm:$0xf]
        %v250 = vld [vmem:[%s212 + $0x70] sm:$0xf]
        %v251 = vld [vmem:[%s212 + $0x74] sm:$0xf]
        %v252 = vld [vmem:[%s212 + $0x78] sm:$0xf]
        %v253 = vld [vmem:[%s212 + $0x7c] sm:$0xf]
        %v254 = vld [vmem:[%s2] sm:$0xf]
        %v255 = vld [vmem:[%s2 + $0x4] sm:$0xf]
        %v256 = vld [vmem:[%s2 + $0x8] sm:$0xf]
        %v257 = vld [vmem:[%s2 + $0xc] sm:$0xf]
        %v258 = vld [vmem:[%s2 + $0x10] sm:$0x3]
        %v259 = vld [vmem:[%s3] sm:$0x1]
        %v261 = vlaneseq
        %v262 = vshrl.u32 %v261, 7
        %v263 = vsub.s32 0, %v262
        %v264 = vrot.slane %v259, %v263
        %v298 = vunpack.c.l.b16 %v222
        %v299 = vunpack.c.l.b16 %v223
        %v300 = vunpack.c.l.b16 %v224
        %v301 = vunpack.c.l.b16 %v225
        %v302 = vunpack.c.l.b16 %v226
        %v303 = vunpack.c.l.b16 %v227
        %v304 = vunpack.c.l.b16 %v228
        %v305 = vunpack.c.l.b16 %v229
        %v306 = vunpack.c.l.b16 %v230
        %v307 = vunpack.c.l.b16 %v231
        %v308 = vunpack.c.l.b16 %v232
        %v309 = vunpack.c.l.b16 %v233
        %v310 = vunpack.c.l.b16 %v234
        %v311 = vunpack.c.l.b16 %v235
        %v312 = vunpack.c.l.b16 %v236
        %v313 = vunpack.c.l.b16 %v237
        %v314 = vunpack.c.l.b16 %v238
        %v315 = vunpack.c.l.b16 %v239
        %v316 = vunpack.c.l.b16 %v240
        %v317 = vunpack.c.l.b16 %v241
        %v318 = vunpack.c.l.b16 %v242
        %v319 = vunpack.c.l.b16 %v243
        %v320 = vunpack.c.l.b16 %v244
        %v321 = vunpack.c.l.b16 %v245
        %v322 = vunpack.c.l.b16 %v246
        %v323 = vunpack.c.l.b16 %v247
        %v324 = vunpack.c.l.b16 %v248
        %v325 = vunpack.c.l.b16 %v249
        %v326 = vunpack.c.l.b16 %v250
        %v327 = vunpack.c.l.b16 %v251
        %v328 = vunpack.c.l.b16 %v252
        %v329 = vunpack.c.l.b16 %v253
        %v330 = vpack.c.b16 %v299, %v298
        %v331 = vpack.c.b16 %v301, %v300
        %v332 = vpack.c.b16 %v303, %v302
        %v333 = vpack.c.b16 %v305, %v304
        %v334 = vpack.c.b16 %v307, %v306
        %v335 = vpack.c.b16 %v309, %v308
        %v336 = vpack.c.b16 %v311, %v310
        %v337 = vpack.c.b16 %v313, %v312
        %v338 = vpack.c.b16 %v315, %v314
        %v339 = vpack.c.b16 %v317, %v316
        %v340 = vpack.c.b16 %v319, %v318
        %v341 = vpack.c.b16 %v321, %v320
        %v342 = vpack.c.b16 %v323, %v322
        %v343 = vpack.c.b16 %v325, %v324
        %v344 = vpack.c.b16 %v327, %v326
        %v345 = vpack.c.b16 %v329, %v328
        %v351 = vunpack.c.l.b16 %v254
        %v352 = vunpack.c.l.b16 %v255
        %v353 = vunpack.c.l.b16 %v256
        %v354 = vunpack.c.l.b16 %v257
        %v355 = vunpack.c.l.b16 %v258
        %v356 = vpack.c.b16 %v352, %v351
        %v357 = vpack.c.b16 %v354, %v353
        %v358 = vpack.c.b16 %v355, %v355
        %vm361 = vcmask 293888
        %v363 = vsel %vm361, %v330, 0
        %v366 = vsel %vm361, %v331, 0
        %v369 = vsel %vm361, %v332, 0
        %v372 = vsel %vm361, %v333, 0
        %v375 = vsel %vm361, %v334, 0
        %v378 = vsel %vm361, %v335, 0
        %v381 = vsel %vm361, %v336, 0
        %v384 = vsel %vm361, %v337, 0
        %v387 = vsel %vm361, %v338, 0
        %v390 = vsel %vm361, %v339, 0
        %v393 = vsel %vm361, %v340, 0
        %v396 = vsel %vm361, %v341, 0
        %v399 = vsel %vm361, %v342, 0
        %v402 = vsel %vm361, %v343, 0
        %v405 = vsel %vm361, %v344, 0
        %v408 = vsel %vm361, %v345, 0
        %vm410 = vcmask 1041408
        %v412 = vsel %vm410, %v358, 0
        %414 = vmatprep.subr.bf16.mxu0 0
        %415 = vmatpush1.bf16.msra.mxu0 0
        %416 = vmatprep.subr.bf16.mxu0 0
        %417 = vmatpush1.bf16.msra.mxu0 0
        %418 = vmatprep.subr.bf16.mxu0 0
        %419 = vmatpush1.bf16.msra.mxu0 0
        %420 = vmatprep.subr.bf16.mxu0 0
        %421 = vmatpush1.bf16.msra.mxu0 0
        %422 = vmatprep.subr.bf16.mxu0 0
        %423 = vmatpush1.bf16.msra.mxu0 0
        %424 = vmatprep.subr.bf16.mxu0 0
        %425 = vmatpush1.bf16.msra.mxu0 %v412
        %426 = vmatprep.subr.bf16.mxu0 0
        %427 = vmatpush1.bf16.msra.mxu0 %v357
        %428 = vmatprep.subr.bf16.mxu0 0
        %429 = vmatpush1.bf16.msra.mxu0 %v356
        %430 = vmatprep.subr.bf16.mxu0 0
        %431 = vmatpush2.bf16.msra.mxu0 0
        %432 = vmatprep.subr.bf16.mxu0 0
        %433 = vmatpush2.bf16.msra.mxu0 0
        %434 = vmatprep.subr.bf16.mxu0 0
        %435 = vmatpush2.bf16.msra.mxu0 0
        %436 = vmatprep.subr.bf16.mxu0 0
        %437 = vmatpush2.bf16.msra.mxu0 0
        %438 = vmatprep.subr.bf16.mxu0 0
        %439 = vmatpush2.bf16.msra.mxu0 0
        %440 = vmatprep.subr.bf16.mxu0 0
        %441 = vmatpush2.bf16.msra.mxu0 0
        %442 = vmatprep.subr.bf16.mxu0 0
        %443 = vmatpush2.bf16.msra.mxu0 0
        %444 = vmatprep.subr.bf16.mxu0 0
        %445 = vmatpush2.bf16.msra.mxu0 0
        %446 = vmatprep.mubr.bf16.mxu0 0
        %447 = vmatmul.mubr.bf16.gmra.mxu0 %v363
        %v448 = vpop.f32.mrf.mxu0
        %v449 = vadd.f32 %v264, %v448
        %v450 = vpop.f32.mrf.mxu0
        %v451 = vpop.f32.mrf.mxu0
        %v452 = vadd.f32 %v264, %v451
        %v453 = vpop.f32.mrf.mxu0
        %454 = vmatprep.mubr.bf16.mxu0 0
        %455 = vmatmul.mubr.bf16.gmra.mxu0 %v366
        %v456 = vpop.f32.mrf.mxu0
        %v457 = vadd.f32 %v264, %v456
        %v458 = vpop.f32.mrf.mxu0
        %v459 = vpop.f32.mrf.mxu0
        %v460 = vadd.f32 %v264, %v459
        %v461 = vpop.f32.mrf.mxu0
        %462 = vmatprep.mubr.bf16.mxu0 0
        %463 = vmatmul.mubr.bf16.gmra.mxu0 %v369
        %v464 = vpop.f32.mrf.mxu0
        %v465 = vadd.f32 %v264, %v464
        %v466 = vpop.f32.mrf.mxu0
        %v467 = vpop.f32.mrf.mxu0
        %v468 = vadd.f32 %v264, %v467
        %v469 = vpop.f32.mrf.mxu0
        %470 = vmatprep.mubr.bf16.mxu0 0
        %471 = vmatmul.mubr.bf16.gmra.mxu0 %v372
        %v472 = vpop.f32.mrf.mxu0
        %v473 = vadd.f32 %v264, %v472
        %v474 = vpop.f32.mrf.mxu0
        %v475 = vpop.f32.mrf.mxu0
        %v476 = vadd.f32 %v264, %v475
        %v477 = vpop.f32.mrf.mxu0
        %478 = vmatprep.mubr.bf16.mxu0 0
        %479 = vmatmul.mubr.bf16.gmra.mxu0 %v375
        %v480 = vpop.f32.mrf.mxu0
        %v481 = vadd.f32 %v264, %v480
        %v482 = vpop.f32.mrf.mxu0
        %v483 = vpop.f32.mrf.mxu0
        %v484 = vadd.f32 %v264, %v483
        %v485 = vpop.f32.mrf.mxu0
        %486 = vmatprep.mubr.bf16.mxu0 0
        %487 = vmatmul.mubr.bf16.gmra.mxu0 %v378
        %v488 = vpop.f32.mrf.mxu0
        %v489 = vadd.f32 %v264, %v488
        %v490 = vpop.f32.mrf.mxu0
        %v491 = vpop.f32.mrf.mxu0
        %v492 = vadd.f32 %v264, %v491
        %v493 = vpop.f32.mrf.mxu0
        %494 = vmatprep.mubr.bf16.mxu0 0
        %495 = vmatmul.mubr.bf16.gmra.mxu0 %v381
        %v496 = vpop.f32.mrf.mxu0
        %v497 = vadd.f32 %v264, %v496
        %v498 = vpop.f32.mrf.mxu0
        %v499 = vpop.f32.mrf.mxu0
        %v500 = vadd.f32 %v264, %v499
        %v501 = vpop.f32.mrf.mxu0
        %502 = vmatprep.mubr.bf16.mxu0 0
        %503 = vmatmul.mubr.bf16.gmra.mxu0 %v384
        %v504 = vpop.f32.mrf.mxu0
        %v505 = vadd.f32 %v264, %v504
        %v506 = vpop.f32.mrf.mxu0
        %v507 = vpop.f32.mrf.mxu0
        %v508 = vadd.f32 %v264, %v507
        %v509 = vpop.f32.mrf.mxu0
        %510 = vmatprep.mubr.bf16.mxu0 0
        %511 = vmatmul.mubr.bf16.gmra.mxu0 %v387
        %v512 = vpop.f32.mrf.mxu0
        %v513 = vadd.f32 %v264, %v512
        %v514 = vpop.f32.mrf.mxu0
        %v515 = vpop.f32.mrf.mxu0
        %v516 = vadd.f32 %v264, %v515
        %v517 = vpop.f32.mrf.mxu0
        %518 = vmatprep.mubr.bf16.mxu0 0
        %519 = vmatmul.mubr.bf16.gmra.mxu0 %v390
        %v520 = vpop.f32.mrf.mxu0
        %v521 = vadd.f32 %v264, %v520
        %v522 = vpop.f32.mrf.mxu0
        %v523 = vpop.f32.mrf.mxu0
        %v524 = vadd.f32 %v264, %v523
        %v525 = vpop.f32.mrf.mxu0
        %526 = vmatprep.mubr.bf16.mxu0 0
        %527 = vmatmul.mubr.bf16.gmra.mxu0 %v393
        %v528 = vpop.f32.mrf.mxu0
        %v529 = vadd.f32 %v264, %v528
        %v530 = vpop.f32.mrf.mxu0
        %v531 = vpop.f32.mrf.mxu0
        %v532 = vadd.f32 %v264, %v531
        %v533 = vpop.f32.mrf.mxu0
        %534 = vmatprep.mubr.bf16.mxu0 0
        %535 = vmatmul.mubr.bf16.gmra.mxu0 %v396
        %v536 = vpop.f32.mrf.mxu0
        %v537 = vadd.f32 %v264, %v536
        %v538 = vpop.f32.mrf.mxu0
        %v539 = vpop.f32.mrf.mxu0
        %v540 = vadd.f32 %v264, %v539
        %v541 = vpop.f32.mrf.mxu0
        %542 = vmatprep.mubr.bf16.mxu0 0
        %543 = vmatmul.mubr.bf16.gmra.mxu0 %v399
        %v544 = vpop.f32.mrf.mxu0
        %v545 = vadd.f32 %v264, %v544
        %v546 = vpop.f32.mrf.mxu0
        %v547 = vpop.f32.mrf.mxu0
        %v548 = vadd.f32 %v264, %v547
        %v549 = vpop.f32.mrf.mxu0
        %550 = vmatprep.mubr.bf16.mxu0 0
        %551 = vmatmul.mubr.bf16.gmra.mxu0 %v402
        %v552 = vpop.f32.mrf.mxu0
        %v553 = vadd.f32 %v264, %v552
        %v554 = vpop.f32.mrf.mxu0
        %v555 = vpop.f32.mrf.mxu0
        %v556 = vadd.f32 %v264, %v555
        %v557 = vpop.f32.mrf.mxu0
        %558 = vmatprep.mubr.bf16.mxu0 0
        %559 = vmatmul.mubr.bf16.gmra.mxu0 %v405
        %v560 = vpop.f32.mrf.mxu0
        %v561 = vadd.f32 %v264, %v560
        %v562 = vpop.f32.mrf.mxu0
        %v563 = vpop.f32.mrf.mxu0
        %v564 = vadd.f32 %v264, %v563
        %v565 = vpop.f32.mrf.mxu0
        %566 = vmatprep.mubr.bf16.mxu0 0
        %567 = vmatmul.mubr.bf16.gmra.mxu0 %v408
        %v568 = vpop.f32.mrf.mxu0
        %v569 = vadd.f32 %v264, %v568
        %v570 = vpop.f32.mrf.mxu0
        %v571 = vpop.f32.mrf.mxu0
        %v572 = vadd.f32 %v264, %v571
        %v573 = vpop.f32.mrf.mxu0
        %574 = vdwg.mxu0
        %v575 = vld [vmem:[%s218] sm:$0xff]
        %v576 = vld [vmem:[%s218 + $0x8] sm:$0xff]
        %v577 = vld [vmem:[%s218 + $0x10] sm:$0xff]
        %v578 = vld [vmem:[%s218 + $0x18] sm:$0xff]
        %v579 = vld [vmem:[%s218 + $0x20] sm:$0xff]
        %v580 = vld [vmem:[%s218 + $0x28] sm:$0xff]
        %v581 = vld [vmem:[%s218 + $0x30] sm:$0xff]
        %v582 = vld [vmem:[%s218 + $0x38] sm:$0xff]
        %v583 = vld [vmem:[%s218 + $0x40] sm:$0xff]
        %v584 = vld [vmem:[%s218 + $0x48] sm:$0xff]
        %v585 = vld [vmem:[%s218 + $0x50] sm:$0xff]
        %v586 = vld [vmem:[%s218 + $0x58] sm:$0xff]
        %v587 = vld [vmem:[%s218 + $0x60] sm:$0xff]
        %v588 = vld [vmem:[%s218 + $0x68] sm:$0xff]
        %v589 = vld [vmem:[%s218 + $0x70] sm:$0xff]
        %v590 = vld [vmem:[%s218 + $0x78] sm:$0xff]
        %v591 = vld [vmem:[%s218 + $0x80] sm:$0xff]
        %v592 = vld [vmem:[%s218 + $0x88] sm:$0xff]
        %v593 = vld [vmem:[%s218 + $0x90] sm:$0xff]
        %v594 = vld [vmem:[%s218 + $0x98] sm:$0xff]
        %v595 = vld [vmem:[%s218 + $0xa0] sm:$0xff]
        %v596 = vld [vmem:[%s218 + $0xa8] sm:$0xff]
        %v597 = vld [vmem:[%s218 + $0xb0] sm:$0xff]
        %v598 = vld [vmem:[%s218 + $0xb8] sm:$0xff]
        %v599 = vld [vmem:[%s218 + $0xc0] sm:$0xff]
        %v600 = vld [vmem:[%s218 + $0xc8] sm:$0xff]
        %v601 = vld [vmem:[%s218 + $0xd0] sm:$0xff]
        %v602 = vld [vmem:[%s218 + $0xd8] sm:$0xff]
        %v603 = vld [vmem:[%s218 + $0xe0] sm:$0xff]
        %v604 = vld [vmem:[%s218 + $0xe8] sm:$0xff]
        %v605 = vld [vmem:[%s218 + $0xf0] sm:$0xff]
        %v606 = vld [vmem:[%s218 + $0xf8] sm:$0xff]
        %608 = vset.pattern.permute.xlu0 0
        %609 = vperm.xlu0 %608, %v575
        %v610 = vpop.permute.xlu0 %609
        %613 = vset.pattern.permute.xlu0 0
        %614 = vperm.xlu0 %613, %v576
        %v615 = vpop.permute.xlu0 %614
        %618 = vset.pattern.permute.xlu0 0
        %619 = vperm.xlu0 %618, %v577
        %v620 = vpop.permute.xlu0 %619
        %623 = vset.pattern.permute.xlu0 0
        %624 = vperm.xlu0 %623, %v578
        %v625 = vpop.permute.xlu0 %624
        %628 = vset.pattern.permute.xlu0 0
        %629 = vperm.xlu0 %628, %v579
        %v630 = vpop.permute.xlu0 %629
        %633 = vset.pattern.permute.xlu0 0
        %634 = vperm.xlu0 %633, %v580
        %v635 = vpop.permute.xlu0 %634
        %638 = vset.pattern.permute.xlu0 0
        %639 = vperm.xlu0 %638, %v581
        %v640 = vpop.permute.xlu0 %639
        %643 = vset.pattern.permute.xlu0 0
        %644 = vperm.xlu0 %643, %v582
        %v645 = vpop.permute.xlu0 %644
        %648 = vset.pattern.permute.xlu0 0
        %649 = vperm.xlu0 %648, %v583
        %v650 = vpop.permute.xlu0 %649
        %653 = vset.pattern.permute.xlu0 0
        %654 = vperm.xlu0 %653, %v584
        %v655 = vpop.permute.xlu0 %654
        %658 = vset.pattern.permute.xlu0 0
        %659 = vperm.xlu0 %658, %v585
        %v660 = vpop.permute.xlu0 %659
        %663 = vset.pattern.permute.xlu0 0
        %664 = vperm.xlu0 %663, %v586
        %v665 = vpop.permute.xlu0 %664
        %668 = vset.pattern.permute.xlu0 0
        %669 = vperm.xlu0 %668, %v587
        %v670 = vpop.permute.xlu0 %669
        %673 = vset.pattern.permute.xlu0 0
        %674 = vperm.xlu0 %673, %v588
        %v675 = vpop.permute.xlu0 %674
        %678 = vset.pattern.permute.xlu0 0
        %679 = vperm.xlu0 %678, %v589
        %v680 = vpop.permute.xlu0 %679
        %683 = vset.pattern.permute.xlu0 0
        %684 = vperm.xlu0 %683, %v590
        %v685 = vpop.permute.xlu0 %684
        %688 = vset.pattern.permute.xlu0 0
        %689 = vperm.xlu0 %688, %v591
        %v690 = vpop.permute.xlu0 %689
        %693 = vset.pattern.permute.xlu0 0
        %694 = vperm.xlu0 %693, %v592
        %v695 = vpop.permute.xlu0 %694
        %698 = vset.pattern.permute.xlu0 0
        %699 = vperm.xlu0 %698, %v593
        %v700 = vpop.permute.xlu0 %699
        %703 = vset.pattern.permute.xlu0 0
        %704 = vperm.xlu0 %703, %v594
        %v705 = vpop.permute.xlu0 %704
        %708 = vset.pattern.permute.xlu0 0
        %709 = vperm.xlu0 %708, %v595
        %v710 = vpop.permute.xlu0 %709
        %713 = vset.pattern.permute.xlu0 0
        %714 = vperm.xlu0 %713, %v596
        %v715 = vpop.permute.xlu0 %714
        %718 = vset.pattern.permute.xlu0 0
        %719 = vperm.xlu0 %718, %v597
        %v720 = vpop.permute.xlu0 %719
        %723 = vset.pattern.permute.xlu0 0
        %724 = vperm.xlu0 %723, %v598
        %v725 = vpop.permute.xlu0 %724
        %728 = vset.pattern.permute.xlu0 0
        %729 = vperm.xlu0 %728, %v599
        %v730 = vpop.permute.xlu0 %729
        %733 = vset.pattern.permute.xlu0 0
        %734 = vperm.xlu0 %733, %v600
        %v735 = vpop.permute.xlu0 %734
        %738 = vset.pattern.permute.xlu0 0
        %739 = vperm.xlu0 %738, %v601
        %v740 = vpop.permute.xlu0 %739
        %743 = vset.pattern.permute.xlu0 0
        %744 = vperm.xlu0 %743, %v602
        %v745 = vpop.permute.xlu0 %744
        %748 = vset.pattern.permute.xlu0 0
        %749 = vperm.xlu0 %748, %v603
        %v750 = vpop.permute.xlu0 %749
        %753 = vset.pattern.permute.xlu0 0
        %754 = vperm.xlu0 %753, %v604
        %v755 = vpop.permute.xlu0 %754
        %758 = vset.pattern.permute.xlu0 0
        %759 = vperm.xlu0 %758, %v605
        %v760 = vpop.permute.xlu0 %759
        %763 = vset.pattern.permute.xlu0 0
        %764 = vperm.xlu0 %763, %v606
        %v765 = vpop.permute.xlu0 %764
        %v767 = vmul.f32 %v449, %v610
        %v768 = vmul.f32 %v452, %v615
        %v769 = vmul.f32 %v457, %v620
        %v770 = vmul.f32 %v460, %v625
        %v771 = vmul.f32 %v465, %v630
        %v772 = vmul.f32 %v468, %v635
        %v773 = vmul.f32 %v473, %v640
        %v774 = vmul.f32 %v476, %v645
        %v775 = vmul.f32 %v481, %v650
        %v776 = vmul.f32 %v484, %v655
        %v777 = vmul.f32 %v489, %v660
        %v778 = vmul.f32 %v492, %v665
        %v779 = vmul.f32 %v497, %v670
        %v780 = vmul.f32 %v500, %v675
        %v781 = vmul.f32 %v505, %v680
        %v782 = vmul.f32 %v508, %v685
        %v783 = vmul.f32 %v513, %v690
        %v784 = vmul.f32 %v516, %v695
        %v785 = vmul.f32 %v521, %v700
        %v786 = vmul.f32 %v524, %v705
        %v787 = vmul.f32 %v529, %v710
        %v788 = vmul.f32 %v532, %v715
        %v789 = vmul.f32 %v537, %v720
        %v790 = vmul.f32 %v540, %v725
        %v791 = vmul.f32 %v545, %v730
        %v792 = vmul.f32 %v548, %v735
        %v793 = vmul.f32 %v553, %v740
        %v794 = vmul.f32 %v556, %v745
        %v795 = vmul.f32 %v561, %v750
        %v796 = vmul.f32 %v564, %v755
        %v797 = vmul.f32 %v569, %v760
        %v798 = vmul.f32 %v572, %v765
        %v799 = vmax.f32 %v767, 0.0
        %v800 = vmax.f32 %v768, 0.0
        %v801 = vmax.f32 %v769, 0.0
        %v802 = vmax.f32 %v770, 0.0
        %v803 = vmax.f32 %v771, 0.0
        %v804 = vmax.f32 %v772, 0.0
        %v805 = vmax.f32 %v773, 0.0
        %v806 = vmax.f32 %v774, 0.0
        %v807 = vmax.f32 %v775, 0.0
        %v808 = vmax.f32 %v776, 0.0
        %v809 = vmax.f32 %v777, 0.0
        %v810 = vmax.f32 %v778, 0.0
        %v811 = vmax.f32 %v779, 0.0
        %v812 = vmax.f32 %v780, 0.0
        %v813 = vmax.f32 %v781, 0.0
        %v814 = vmax.f32 %v782, 0.0
        %v815 = vmax.f32 %v783, 0.0
        %v816 = vmax.f32 %v784, 0.0
        %v817 = vmax.f32 %v785, 0.0
        %v818 = vmax.f32 %v786, 0.0
        %v819 = vmax.f32 %v787, 0.0
        %v820 = vmax.f32 %v788, 0.0
        %v821 = vmax.f32 %v789, 0.0
        %v822 = vmax.f32 %v790, 0.0
        %v823 = vmax.f32 %v791, 0.0
        %v824 = vmax.f32 %v792, 0.0
        %v825 = vmax.f32 %v793, 0.0
        %v826 = vmax.f32 %v794, 0.0
        %v827 = vmax.f32 %v795, 0.0
        %v828 = vmax.f32 %v796, 0.0
        %v829 = vmax.f32 %v797, 0.0
        %v830 = vmax.f32 %v798, 0.0
        %831 = vst [vmem:[%s207] sm:$0xff] %v799
        %832 = vst [vmem:[%s207 + $0x8] sm:$0xff] %v800
        %833 = vst [vmem:[%s207 + $0x10] sm:$0xff] %v801
        %834 = vst [vmem:[%s207 + $0x18] sm:$0xff] %v802
        %835 = vst [vmem:[%s207 + $0x20] sm:$0xff] %v803
        %836 = vst [vmem:[%s207 + $0x28] sm:$0xff] %v804
        %837 = vst [vmem:[%s207 + $0x30] sm:$0xff] %v805
        %838 = vst [vmem:[%s207 + $0x38] sm:$0xff] %v806
        %839 = vst [vmem:[%s207 + $0x40] sm:$0xff] %v807
        %840 = vst [vmem:[%s207 + $0x48] sm:$0xff] %v808
        %841 = vst [vmem:[%s207 + $0x50] sm:$0xff] %v809
        %842 = vst [vmem:[%s207 + $0x58] sm:$0xff] %v810
        %843 = vst [vmem:[%s207 + $0x60] sm:$0xff] %v811
        %844 = vst [vmem:[%s207 + $0x68] sm:$0xff] %v812
        %845 = vst [vmem:[%s207 + $0x70] sm:$0xff] %v813
        %846 = vst [vmem:[%s207 + $0x78] sm:$0xff] %v814
        %847 = vst [vmem:[%s207 + $0x80] sm:$0xff] %v815
        %848 = vst [vmem:[%s207 + $0x88] sm:$0xff] %v816
        %849 = vst [vmem:[%s207 + $0x90] sm:$0xff] %v817
        %850 = vst [vmem:[%s207 + $0x98] sm:$0xff] %v818
        %851 = vst [vmem:[%s207 + $0xa0] sm:$0xff] %v819
        %852 = vst [vmem:[%s207 + $0xa8] sm:$0xff] %v820
        %853 = vst [vmem:[%s207 + $0xb0] sm:$0xff] %v821
        %854 = vst [vmem:[%s207 + $0xb8] sm:$0xff] %v822
        %855 = vst [vmem:[%s207 + $0xc0] sm:$0xff] %v823
        %856 = vst [vmem:[%s207 + $0xc8] sm:$0xff] %v824
        %857 = vst [vmem:[%s207 + $0xd0] sm:$0xff] %v825
        %858 = vst [vmem:[%s207 + $0xd8] sm:$0xff] %v826
        %859 = vst [vmem:[%s207 + $0xe0] sm:$0xff] %v827
        %860 = vst [vmem:[%s207 + $0xe8] sm:$0xff] %v828
        %861 = vst [vmem:[%s207 + $0xf0] sm:$0xff] %v829
        %862 = vst [vmem:[%s207 + $0xf8] sm:$0xff] %v830
        %s863 = sand.u32 %s120, 1
        %s864 = scalar_lea.sflag [#allocation3], %s863
        %s865 = sand.u32 %s120, 1
        %s866 = smul.addr %s865, 256
        %s867 = scalar_lea.vmem [#allocation2], %s866
        // Predicated region
        $region37: #{convolve.1} parent=35 // pred_check
          %p868 = pneg %p130
        $region38: #{convolve.1} parent=35 // pred_check_branch
          %870 = sbr.rel (%p868) target = $region40
        $region39: #{convolve.1} parent=35 // pred_region
          %s871 = smul.u32 32, %s18
          %s873 = ssub.s32 4096, 4096
          %874 = vsyncadd %s864, %s873
          %s875 = smul.addr %s871, 128
          %s876 = scalar_lea.hbm %s4, %s875
          %s877 = sshll.u32 %s867, 4
          %s878 = int_to_ptr.vmem [resolvable:$true] %s877
          %883 = dma.vmem_to_hbm [thread:$0]  %s878, 4096, %s876, %s864, 128, 128, 8
        $region40: #{convolve.1} parent=35 // pred_fallthru
          _
      $region36: #{convolve.1} parent=5 // pred_fallthru
        _
      %p884 = scmp.le.s32.totalorder 2, %s13
      // Predicated region
      $region41: #{convolve.1} parent=5 // pred_check
        %p885 = pneg %p884
      $region42: #{convolve.1} parent=5 // pred_check_branch
        %887 = sbr.rel (%p885) target = $region44
      $region43: #{convolve.1} parent=5 // pred_region
        %s888 = ssub.s32 %s13, 2
        // Predicated region
        $region45: #{convolve.1} parent=43 // pred_check
          %p889 = pneg %p136
        $region46: #{convolve.1} parent=43 // pred_check_branch
          %891 = sbr.rel (%p889) target = $region48
        $region47: #{convolve.1} parent=43 // pred_region
          %s892 = sand.u32 %s121, 1
          %s893 = scalar_lea.sflag [#allocation3], %s892
          %s894 = sand.u32 %s121, 1
          %s895 = smul.addr %s894, 256
          %s896 = scalar_lea.vmem [#allocation2], %s895
          %897 = dma.done %s893, 4096
        $region48: #{convolve.1} parent=43 // pred_fallthru
          _
      $region44: #{convolve.1} parent=5 // pred_fallthru
        _
    $region6: #{convolve.1} parent=1 // loop_footer
      %s17 = sadd.s32 1, %s13
    $region7: #{convolve.1} parent=1 // loop_footer_branch
      %12 = sbr.rel target = $region3
    $region8: #{convolve.1} parent=1 // loop_exit
      _
    %898 = vsyncpa [#allocation3], 1
    %s899 = scalar_lea.sflag [#allocation3], 1
    %900 = vsyncpa %s899, 1

</llo_original>
